<compile_context>
chip_gen: v6e
topology: v6e:2x2x1
jax: 0.10.0
libtpu: 0.0.40
codegen_flags: <defaults>
</compile_context>

<pallas_src>
import jax
import jax.numpy as jnp
from jax.experimental import pallas as pl
from jax.experimental.pallas import tpu as pltpu


def _round_up(x, m):
    return ((x + m - 1) // m) * m


def _choose_tile_b(B, tile_b):
    """Batch-tile (lane axis) size.

    Tiny batches get a single full-extent block; otherwise tiles are
    lane-aligned (multiple of 128), at most `tile_b`, and capped at
    ceil(B/2) so the grid always has >= 2 steps (v7x 2-TC sharding).
    """
    if B <= 128:
        return B
    tb = min(_round_up(tile_b, 128), _round_up(pl.cdiv(B, 2), 128))
    return max(128, tb)


def actor_kernel(obs_ref, w1_ref, b1_ref, w2_ref, b2_ref, w3_ref, b3_ref,
                 out_ref):
    # obs tile: [obs_dim, TILE_B] f32 -> bf16 for the MXU.
    x_bf = obs_ref[...].astype(jnp.bfloat16)

    # layer1 + ReLU : [hidden, TILE_B]; f32 accumulation, f32 elementwise.
    h1 = jnp.maximum(
        jnp.dot(w1_ref[...], x_bf, preferred_element_type=jnp.float32)
        + b1_ref[...], 0.0)

    # layer2 + ReLU : [hidden, TILE_B]
    h2 = jnp.maximum(
        jnp.dot(w2_ref[...], h1.astype(jnp.bfloat16),
                preferred_element_type=jnp.float32) + b2_ref[...], 0.0)

    # layer3 : [act_dim, TILE_B]
    logits = jnp.dot(w3_ref[...], h2.astype(jnp.bfloat16),
                     preferred_element_type=jnp.float32) + b3_ref[...]

    # Numerically stable softmax over the action (sublane) axis, exact
    # normalization in f32.
    m = jnp.max(logits, axis=0, keepdims=True)
    e = jnp.exp(logits - m)
    denom = jnp.sum(e, axis=0, keepdims=True)
    out_ref[...] = (e / denom).astype(out_ref.dtype)


def actor_forward_t(obs_t, params, *, tile_b=2048, core_parallel=False):
    """Performant entry point: obs_t [obs_dim, B] f32 -> probs_t [act_dim, B] f32.

    No wrapper-side HBM passes: no pad, no weight casts, no transposes.
    """
    w1, b1, w2, b2, w3, b3 = params
    obs_dim, B = obs_t.shape
    hidden = w1.shape[0]
    act_dim = w3.shape[0]

    tb = _choose_tile_b(B, tile_b)
    grid = (pl.cdiv(B, tb),)

    flops = 2 * B * (obs_dim * hidden + hidden * hidden + hidden * act_dim)
    bytes_accessed = (
        B * obs_dim * 4                           # obs in (f32)
        + B * act_dim * 4                         # probs out (f32)
        + (w1.size + w2.size + w3.size) * 2       # bf16 weights (VMEM-resident)
        + (b1.size + b2.size + b3.size) * 4)      # f32 biases
    cost = pl.CostEstimate(flops=flops,
                           transcendentals=B * act_dim,
                           bytes_accessed=bytes_accessed)

    # On v7x, pass core_parallel=True to shard the batch grid axis across the
    # two TensorCores explicitly; default stays PARALLEL for v5e/v6e safety.
    batch_sem = pltpu.CORE_PARALLEL if core_parallel else pltpu.PARALLEL

    return pl.pallas_call(
        actor_kernel,
        out_shape=jax.ShapeDtypeStruct((act_dim, B), jnp.float32),
        grid_spec=pltpu.PrefetchScalarGridSpec(
            num_scalar_prefetch=0,
            grid=grid,
            in_specs=[
                pl.BlockSpec((obs_dim, tb), lambda i: (0, i)),       # obs tile
                pl.BlockSpec((hidden, obs_dim), lambda i: (0, 0)),   # w1 (resident)
                pl.BlockSpec((hidden, 1), lambda i: (0, 0)),         # b1
                pl.BlockSpec((hidden, hidden), lambda i: (0, 0)),    # w2
                pl.BlockSpec((hidden, 1), lambda i: (0, 0)),         # b2
                pl.BlockSpec((act_dim, hidden), lambda i: (0, 0)),   # w3
                pl.BlockSpec((act_dim, 1), lambda i: (0, 0)),        # b3
            ],
            out_specs=pl.BlockSpec((act_dim, tb), lambda i: (0, i)),
        ),
        compiler_params=pltpu.CompilerParams(
            dimension_semantics=(batch_sem,)),
        cost_estimate=cost,
    )(obs_t, w1, b1, w2, b2, w3, b3)


def actor_forward(obs, params, *, tile_b=2048, core_parallel=False):
    """PyTorch-native interface: obs [B, obs_dim] f32 -> probs [B, act_dim] f32.

    Pure layout plumbing (transpose in / transpose out) around
    actor_forward_t; callers that can keep activations transposed should use
    actor_forward_t directly and skip these two passes.
    """
    out_t = actor_forward_t(obs.T, params, tile_b=tile_b,
                            core_parallel=core_parallel)
    return out_t.T


def init_params(key, obs_dim, act_dim, hidden=64):
    # PyTorch-nn.Linear-style uniform(-1/sqrt(fan_in), 1/sqrt(fan_in)).
    # Weights are stored [out, in] in bf16 (MXU-ready, no per-call cast);
    # biases are [out, 1] f32.
    ks = jax.random.split(key, 6)

    def lin(kw, kb, fan_in, fan_out):
        bound = 1.0 / jnp.sqrt(jnp.float32(fan_in))
        w = jax.random.uniform(kw, (fan_out, fan_in), jnp.float32, -bound, bound)
        b = jax.random.uniform(kb, (fan_out, 1), jnp.float32, -bound, bound)
        return w.astype(jnp.bfloat16), b

    w1, b1 = lin(ks[0], ks[1], obs_dim, hidden)
    w2, b2 = lin(ks[2], ks[3], hidden, hidden)
    w3, b3 = lin(ks[4], ks[5], hidden, act_dim)
    return (w1, b1, w2, b2, w3, b3)


def actor_ref(obs, params):
    # Pure-JAX f32 reference (same math as the PyTorch module, using the
    # bf16-stored weights upcast to f32).
    w1, b1, w2, b2, w3, b3 = params
    w1, w2, w3 = (w1.astype(jnp.float32), w2.astype(jnp.float32),
                  w3.astype(jnp.float32))
    h1 = jax.nn.relu(obs @ w1.T + b1[:, 0])
    h2 = jax.nn.relu(h1 @ w2.T + b2[:, 0])
    return jax.nn.softmax(h2 @ w3.T + b3[:, 0], axis=-1)


if __name__ == "__main__":
    key = jax.random.PRNGKey(0)
    k_params, k1, k2, k3 = jax.random.split(key, 4)

    obs_dim, act_dim = 32, 8
    params = init_params(k_params, obs_dim, act_dim)

    # 1) tiny batch: single full-extent block, one grid step.
    obs = jax.random.normal(k1, (8, obs_dim), jnp.float32)
    out = jax.block_until_ready(actor_forward(obs, params))
    ref = actor_ref(obs, params)
    assert out.shape == (8, act_dim)
    assert jnp.allclose(out, ref, atol=2e-2)            # bf16 MXU inputs
    assert jnp.allclose(jnp.sum(out, axis=-1), 1.0, atol=1e-5)  # exact softmax

    # 2) batch grid: B=256 -> tb=128, two lane-dense grid steps, resident weights.
    obs_big = jax.random.normal(k2, (256, obs_dim), jnp.float32)
    out_big = jax.block_until_ready(actor_forward(obs_big, params))
    ref_big = actor_ref(obs_big, params)
    assert out_big.shape == (256, act_dim)
    assert jnp.allclose(out_big, ref_big, atol=2e-2)
    assert jnp.allclose(jnp.sum(out_big, axis=-1), 1.0, atol=1e-5)

    # 3) ragged batch (no wrapper pad): B=200 -> tb=128, masked last tile.
    obs_rag = jax.random.normal(k3, (200, obs_dim), jnp.float32)
    out_rag = jax.block_until_ready(actor_forward(obs_rag, params))
    ref_rag = actor_ref(obs_rag, params)
    assert out_rag.shape == (200, act_dim)
    assert jnp.allclose(out_rag, ref_rag, atol=2e-2)
    assert jnp.allclose(jnp.sum(out_rag, axis=-1), 1.0, atol=1e-5)

    print("KERNEL_OK")
</pallas_src>

<mosaic_0001>
module attributes {stable_mosaic.version = 11 : i64} {
  func.func @actor_kernel(%arg0: i32, %arg1: memref<32x8xf32, #tpu.memory_space<vmem>>, %arg2: memref<64x32xbf16, #tpu.memory_space<vmem>>, %arg3: memref<64x1xf32, #tpu.memory_space<vmem>>, %arg4: memref<64x64xbf16, #tpu.memory_space<vmem>>, %arg5: memref<64x1xf32, #tpu.memory_space<vmem>>, %arg6: memref<8x64xbf16, #tpu.memory_space<vmem>>, %arg7: memref<8x1xf32, #tpu.memory_space<vmem>>, %arg8: memref<8x8xf32, #tpu.memory_space<vmem>>) attributes {dimension_semantics = [#tpu.dimension_semantics<parallel>], iteration_bounds = array<i64: 1>, scalar_prefetch = 0 : i64, scratch_operands = 0 : i64, tpu.core_type = #tpu.core_type<tc>, window_params = [{transform_indices = @transform_0, window_bounds = array<i64: 32, 8>}, {pipeline_mode = #tpu.pipeline_mode<synchronous>, transform_indices = @transform_1, window_bounds = array<i64: 64, 32>}, {pipeline_mode = #tpu.pipeline_mode<synchronous>, transform_indices = @transform_2, window_bounds = array<i64: 64, 1>}, {pipeline_mode = #tpu.pipeline_mode<synchronous>, transform_indices = @transform_3, window_bounds = array<i64: 64, 64>}, {pipeline_mode = #tpu.pipeline_mode<synchronous>, transform_indices = @transform_4, window_bounds = array<i64: 64, 1>}, {pipeline_mode = #tpu.pipeline_mode<synchronous>, transform_indices = @transform_5, window_bounds = array<i64: 8, 64>}, {pipeline_mode = #tpu.pipeline_mode<synchronous>, transform_indices = @transform_6, window_bounds = array<i64: 8, 1>}, {transform_indices = @transform_7, window_bounds = array<i64: 8, 8>}]} {
    %c0 = arith.constant 0 : index
    %c0_0 = arith.constant 0 : index
    %0 = vector.load %arg1[%c0, %c0_0] : memref<32x8xf32, #tpu.memory_space<vmem>>, vector<32x8xf32>
    %1 = arith.truncf %0 : vector<32x8xf32> to vector<32x8xbf16>
    %c0_1 = arith.constant 0 : index
    %c0_2 = arith.constant 0 : index
    %2 = vector.load %arg2[%c0_1, %c0_2] : memref<64x32xbf16, #tpu.memory_space<vmem>>, vector<64x32xbf16>
    %cst = arith.constant dense<0.000000e+00> : vector<64x8xf32>
    %3 = tpu.matmul %2, %1, %cst {dimension_numbers = #tpu.dot_dimension_numbers<[1], [0], [0], [1], [0, 0, 1, 1], [], []>} : vector<64x32xbf16>, vector<32x8xbf16>, vector<64x8xf32> -> vector<64x8xf32>
    %c0_3 = arith.constant 0 : index
    %c0_4 = arith.constant 0 : index
    %4 = vector.load %arg3[%c0_3, %c0_4] : memref<64x1xf32, #tpu.memory_space<vmem>>, vector<64x1xf32>
    %5 = vector.broadcast %4 : vector<64x1xf32> to vector<64x8xf32>
    %6 = arith.addf %3, %5 : vector<64x8xf32>
    %cst_5 = arith.constant 0.000000e+00 : f32
    %7 = vector.broadcast %cst_5 : f32 to vector<64x8xf32>
    %8 = arith.maximumf %6, %7 : vector<64x8xf32>
    %c0_6 = arith.constant 0 : index
    %c0_7 = arith.constant 0 : index
    %9 = vector.load %arg4[%c0_6, %c0_7] : memref<64x64xbf16, #tpu.memory_space<vmem>>, vector<64x64xbf16>
    %10 = arith.truncf %8 : vector<64x8xf32> to vector<64x8xbf16>
    %cst_8 = arith.constant dense<0.000000e+00> : vector<64x8xf32>
    %11 = tpu.matmul %9, %10, %cst_8 {dimension_numbers = #tpu.dot_dimension_numbers<[1], [0], [0], [1], [0, 0, 1, 1], [], []>} : vector<64x64xbf16>, vector<64x8xbf16>, vector<64x8xf32> -> vector<64x8xf32>
    %c0_9 = arith.constant 0 : index
    %c0_10 = arith.constant 0 : index
    %12 = vector.load %arg5[%c0_9, %c0_10] : memref<64x1xf32, #tpu.memory_space<vmem>>, vector<64x1xf32>
    %13 = vector.broadcast %12 : vector<64x1xf32> to vector<64x8xf32>
    %14 = arith.addf %11, %13 : vector<64x8xf32>
    %cst_11 = arith.constant 0.000000e+00 : f32
    %15 = vector.broadcast %cst_11 : f32 to vector<64x8xf32>
    %16 = arith.maximumf %14, %15 : vector<64x8xf32>
    %c0_12 = arith.constant 0 : index
    %c0_13 = arith.constant 0 : index
    %17 = vector.load %arg6[%c0_12, %c0_13] : memref<8x64xbf16, #tpu.memory_space<vmem>>, vector<8x64xbf16>
    %18 = arith.truncf %16 : vector<64x8xf32> to vector<64x8xbf16>
    %cst_14 = arith.constant dense<0.000000e+00> : vector<8x8xf32>
    %19 = tpu.matmul %17, %18, %cst_14 {dimension_numbers = #tpu.dot_dimension_numbers<[1], [0], [0], [1], [0, 0, 1, 1], [], []>} : vector<8x64xbf16>, vector<64x8xbf16>, vector<8x8xf32> -> vector<8x8xf32>
    %c0_15 = arith.constant 0 : index
    %c0_16 = arith.constant 0 : index
    %20 = vector.load %arg7[%c0_15, %c0_16] : memref<8x1xf32, #tpu.memory_space<vmem>>, vector<8x1xf32>
    %21 = vector.broadcast %20 : vector<8x1xf32> to vector<8x8xf32>
    %22 = arith.addf %19, %21 : vector<8x8xf32>
    %cst_17 = arith.constant dense<0xFF800000> : vector<8xf32>
    %23 = vector.multi_reduction <maximumf>, %22, %cst_17 [0] : vector<8x8xf32> to vector<8xf32>
    %24 = vector.shape_cast %23 : vector<8xf32> to vector<1x8xf32>
    %25 = vector.broadcast %24 : vector<1x8xf32> to vector<8x8xf32>
    %26 = arith.subf %22, %25 : vector<8x8xf32>
    %27 = math.exp %26 : vector<8x8xf32>
    %cst_18 = arith.constant dense<0.000000e+00> : vector<8xf32>
    %28 = vector.multi_reduction <add>, %27, %cst_18 [0] : vector<8x8xf32> to vector<8xf32>
    %29 = vector.shape_cast %28 : vector<8xf32> to vector<1x8xf32>
    %30 = vector.broadcast %29 : vector<1x8xf32> to vector<8x8xf32>
    %31 = arith.divf %27, %30 : vector<8x8xf32>
    %c0_19 = arith.constant 0 : index
    %c0_20 = arith.constant 0 : index
    %32 = vector.load %arg8[%c0_19, %c0_20] : memref<8x8xf32, #tpu.memory_space<vmem>>, vector<8x8xf32>
    tpu.vector_store %arg8[%c0_19, %c0_20], %31 {strides = array<i32>} : memref<8x8xf32, #tpu.memory_space<vmem>>, vector<8x8xf32>,
    return
  }
  func.func @transform_0(%arg0: i32) -> (i32, i32) {
    %c0_i32 = arith.constant 0 : i32
    %c0_i32_0 = arith.constant 0 : i32
    return %c0_i32, %arg0 : i32, i32
  }
  func.func @transform_1(%arg0: i32) -> (i32, i32) {
    %c0_i32 = arith.constant 0 : i32
    %c0_i32_0 = arith.constant 0 : i32
    %c0_i32_1 = arith.constant 0 : i32
    return %c0_i32, %c0_i32_0 : i32, i32
  }
  func.func @transform_2(%arg0: i32) -> (i32, i32) {
    %c0_i32 = arith.constant 0 : i32
    %c0_i32_0 = arith.constant 0 : i32
    %c0_i32_1 = arith.constant 0 : i32
    return %c0_i32, %c0_i32_0 : i32, i32
  }
  func.func @transform_3(%arg0: i32) -> (i32, i32) {
    %c0_i32 = arith.constant 0 : i32
    %c0_i32_0 = arith.constant 0 : i32
    %c0_i32_1 = arith.constant 0 : i32
    return %c0_i32, %c0_i32_0 : i32, i32
  }
  func.func @transform_4(%arg0: i32) -> (i32, i32) {
    %c0_i32 = arith.constant 0 : i32
    %c0_i32_0 = arith.constant 0 : i32
    %c0_i32_1 = arith.constant 0 : i32
    return %c0_i32, %c0_i32_0 : i32, i32
  }
  func.func @transform_5(%arg0: i32) -> (i32, i32) {
    %c0_i32 = arith.constant 0 : i32
    %c0_i32_0 = arith.constant 0 : i32
    %c0_i32_1 = arith.constant 0 : i32
    return %c0_i32, %c0_i32_0 : i32, i32
  }
  func.func @transform_6(%arg0: i32) -> (i32, i32) {
    %c0_i32 = arith.constant 0 : i32
    %c0_i32_0 = arith.constant 0 : i32
    %c0_i32_1 = arith.constant 0 : i32
    return %c0_i32, %c0_i32_0 : i32, i32
  }
  func.func @transform_7(%arg0: i32) -> (i32, i32) {
    %c0_i32 = arith.constant 0 : i32
    %c0_i32_0 = arith.constant 0 : i32
    return %c0_i32, %arg0 : i32, i32
  }
}

</mosaic_0001>

<llo_original>
// kernel: tpu_custom_call.1
$region0: #{tpu_custom_call.1}
  #allocation0 [shape = 'u32[]', space=smem, size = 0x4, offset = 0x4, fixed_abs, tag = 'smem constant byte address 0x4 - core index']
  #allocation1 [shape = 'u32[144,128]{1,0:T(1,128)}', space=vmem, size = 0x12000, scoped, tag = 'internal scratch']
  %s0 = inlined_call_operand.vmem [shape: f32[32,8], index: 0, kind: input, shape index: {}]
  %s1 = inlined_call_operand.vmem [shape: bf16[64,32], index: 1, kind: input, shape index: {}]
  %s2 = inlined_call_operand.vmem [shape: f32[64,1], index: 2, kind: input, shape index: {}]
  %s3 = inlined_call_operand.vmem [shape: bf16[64,64], index: 3, kind: input, shape index: {}]
  %s4 = inlined_call_operand.vmem [shape: f32[64,1], index: 4, kind: input, shape index: {}]
  %s5 = inlined_call_operand.vmem [shape: bf16[8,64], index: 5, kind: input, shape index: {}]
  %s6 = inlined_call_operand.vmem [shape: f32[8,1], index: 6, kind: input, shape index: {}]
  %s7 = inlined_call_operand.hbm [shape: f32[8,8], index: 7, kind: output, shape index: {}]
  %s8 = sld [smem:[#allocation0]]
  $region38: #{tpu_custom_call.1} parent=0
    _
  %s10 = ssub.s32 1, %s8
  %s11 = scalar_select 0, %s10, %s8
  $region1: #{tpu_custom_call.1} parent=0
    #allocation2 [shape = 'u8[4096]{0}', space=vmem, size = 0x1000, scoped, tag = 'output window, operand 0, single buffered']
    #allocation3 [shape = 's32[1]{0}', space=sflag, size = 0x4, scoped, tag = 'scoped memory for tpu_custom_call.1']
    %12 = vsyncpa [#allocation3], 0
    // Predicated region
    $region2: #{tpu_custom_call.1} parent=1 // pred_check
      _
    $region3: #{tpu_custom_call.1} parent=1 // pred_check_branch
      %14 = sbr.rel (0) target = $region5
    $region4: #{tpu_custom_call.1} parent=1 // pred_region
      _
    $region5: #{tpu_custom_call.1} parent=1 // pred_fallthru
      _
    // Predicated region
    $region6: #{tpu_custom_call.1} parent=1 // pred_check
      _
    $region7: #{tpu_custom_call.1} parent=1 // pred_check_branch
      %16 = sbr.rel (0) target = $region9
    $region8: #{tpu_custom_call.1} parent=1 // pred_region
      _
    $region9: #{tpu_custom_call.1} parent=1 // pred_fallthru
      _
    // Predicated region
    $region10: #{tpu_custom_call.1} parent=1 // pred_check
      _
    $region11: #{tpu_custom_call.1} parent=1 // pred_check_branch
      %18 = sbr.rel (0) target = $region13
    $region12: #{tpu_custom_call.1} parent=1 // pred_region
      _
    $region13: #{tpu_custom_call.1} parent=1 // pred_fallthru
      _
    // Predicated region
    $region14: #{tpu_custom_call.1} parent=1 // pred_check
      _
    $region15: #{tpu_custom_call.1} parent=1 // pred_check_branch
      %20 = sbr.rel (0) target = $region17
    $region16: #{tpu_custom_call.1} parent=1 // pred_region
      _
    $region17: #{tpu_custom_call.1} parent=1 // pred_fallthru
      _
    // Predicated region
    $region18: #{tpu_custom_call.1} parent=1 // pred_check
      _
    $region19: #{tpu_custom_call.1} parent=1 // pred_check_branch
      %22 = sbr.rel (0) target = $region21
    $region20: #{tpu_custom_call.1} parent=1 // pred_region
      _
    $region21: #{tpu_custom_call.1} parent=1 // pred_fallthru
      _
    // Predicated region
    $region22: #{tpu_custom_call.1} parent=1 // pred_check
      _
    $region23: #{tpu_custom_call.1} parent=1 // pred_check_branch
      %24 = sbr.rel (0) target = $region25
    $region24: #{tpu_custom_call.1} parent=1 // pred_region
      _
    $region25: #{tpu_custom_call.1} parent=1 // pred_fallthru
      _
    // Predicated region
    $region26: #{tpu_custom_call.1} parent=1 // pred_check
      _
    $region27: #{tpu_custom_call.1} parent=1 // pred_check_branch
      %26 = sbr.rel (0) target = $region29
    $region28: #{tpu_custom_call.1} parent=1 // pred_region
      _
    $region29: #{tpu_custom_call.1} parent=1 // pred_fallthru
      _
    %v28 = vld [vmem:[%s0] sm:$0xff]
    %v29 = vld [vmem:[%s0 + $0x8] sm:$0xff]
    %v30 = vld [vmem:[%s0 + $0x10] sm:$0xff]
    %v31 = vld [vmem:[%s0 + $0x18] sm:$0xff]
    %v32 = vpack.c.bf16 %v29, %v28
    %v33 = vpack.c.bf16 %v31, %v30
    %v34 = vld [vmem:[%s1] sm:$0xf]
    %v35 = vld [vmem:[%s1 + $0x4] sm:$0xf]
    %v36 = vld [vmem:[%s1 + $0x8] sm:$0xf]
    %v37 = vld [vmem:[%s1 + $0xc] sm:$0xf]
    %v38 = vld [vmem:[%s1 + $0x10] sm:$0xf]
    %v39 = vld [vmem:[%s1 + $0x14] sm:$0xf]
    %v40 = vld [vmem:[%s1 + $0x18] sm:$0xf]
    %v41 = vld [vmem:[%s1 + $0x1c] sm:$0xf]
    %v42 = vld [vmem:[%s2] sm:$0xff]
    %v43 = vld [vmem:[%s2 + $0x8] sm:$0xff]
    %v44 = vld [vmem:[%s2 + $0x10] sm:$0xff]
    %v45 = vld [vmem:[%s2 + $0x18] sm:$0xff]
    %v46 = vld [vmem:[%s2 + $0x20] sm:$0xff]
    %v47 = vld [vmem:[%s2 + $0x28] sm:$0xff]
    %v48 = vld [vmem:[%s2 + $0x30] sm:$0xff]
    %v49 = vld [vmem:[%s2 + $0x38] sm:$0xff]
    %51 = vset.pattern.permute.xlu0 0
    %52 = vperm.xlu0 %51, %v42
    %v53 = vpop.permute.xlu0 %52
    %56 = vset.pattern.permute.xlu0 0
    %57 = vperm.xlu0 %56, %v43
    %v58 = vpop.permute.xlu0 %57
    %61 = vset.pattern.permute.xlu0 0
    %62 = vperm.xlu0 %61, %v44
    %v63 = vpop.permute.xlu0 %62
    %66 = vset.pattern.permute.xlu0 0
    %67 = vperm.xlu0 %66, %v45
    %v68 = vpop.permute.xlu0 %67
    %71 = vset.pattern.permute.xlu0 0
    %72 = vperm.xlu0 %71, %v46
    %v73 = vpop.permute.xlu0 %72
    %76 = vset.pattern.permute.xlu0 0
    %77 = vperm.xlu0 %76, %v47
    %v78 = vpop.permute.xlu0 %77
    %81 = vset.pattern.permute.xlu0 0
    %82 = vperm.xlu0 %81, %v48
    %v83 = vpop.permute.xlu0 %82
    %86 = vset.pattern.permute.xlu0 0
    %87 = vperm.xlu0 %86, %v49
    %v88 = vpop.permute.xlu0 %87
    %v98 = vunpack.c.l.b16 %v34
    %v99 = vunpack.c.l.b16 %v35
    %v100 = vunpack.c.l.b16 %v36
    %v101 = vunpack.c.l.b16 %v37
    %v102 = vunpack.c.l.b16 %v38
    %v103 = vunpack.c.l.b16 %v39
    %v104 = vunpack.c.l.b16 %v40
    %v105 = vunpack.c.l.b16 %v41
    %v106 = vpack.c.b16 %v99, %v98
    %v107 = vpack.c.b16 %v101, %v100
    %v108 = vpack.c.b16 %v103, %v102
    %v109 = vpack.c.b16 %v105, %v104
    %vm110 = vcmask 261120
    %v112 = vsel %vm110, %v106, 0
    %v115 = vsel %vm110, %v107, 0
    %v118 = vsel %vm110, %v108, 0
    %v121 = vsel %vm110, %v109, 0
    %123 = vmatprep.subr.bf16.mxu0 0
    %124 = vmatpush1.bf16.msra.mxu0 0
    %125 = vmatprep.subr.bf16.mxu0 0
    %126 = vmatpush1.bf16.msra.mxu0 0
    %127 = vmatprep.subr.bf16.mxu0 0
    %128 = vmatpush1.bf16.msra.mxu0 0
    %129 = vmatprep.subr.bf16.mxu0 0
    %130 = vmatpush1.bf16.msra.mxu0 0
    %131 = vmatprep.subr.bf16.mxu0 0
    %132 = vmatpush1.bf16.msra.mxu0 0
    %133 = vmatprep.subr.bf16.mxu0 0
    %134 = vmatpush1.bf16.msra.mxu0 0
    %135 = vmatprep.subr.bf16.mxu0 0
    %136 = vmatpush1.bf16.msra.mxu0 %v33
    %137 = vmatprep.subr.bf16.mxu0 0
    %138 = vmatpush1.bf16.msra.mxu0 %v32
    %139 = vmatprep.subr.bf16.mxu0 0
    %140 = vmatpush2.bf16.msra.mxu0 0
    %141 = vmatprep.subr.bf16.mxu0 0
    %142 = vmatpush2.bf16.msra.mxu0 0
    %143 = vmatprep.subr.bf16.mxu0 0
    %144 = vmatpush2.bf16.msra.mxu0 0
    %145 = vmatprep.subr.bf16.mxu0 0
    %146 = vmatpush2.bf16.msra.mxu0 0
    %147 = vmatprep.subr.bf16.mxu0 0
    %148 = vmatpush2.bf16.msra.mxu0 0
    %149 = vmatprep.subr.bf16.mxu0 0
    %150 = vmatpush2.bf16.msra.mxu0 0
    %151 = vmatprep.subr.bf16.mxu0 0
    %152 = vmatpush2.bf16.msra.mxu0 0
    %153 = vmatprep.subr.bf16.mxu0 0
    %154 = vmatpush2.bf16.msra.mxu0 0
    %155 = vmatprep.mubr.bf16.mxu0 0
    %156 = vmatmul.mubr.bf16.gmra.mxu0 %v112
    %v157 = vpop.f32.mrf.mxu0
    %v158 = vadd.f32 %v53, %v157
    %v159 = vpop.f32.mrf.mxu0
    %v160 = vpop.f32.mrf.mxu0
    %v161 = vadd.f32 %v58, %v160
    %v162 = vpop.f32.mrf.mxu0
    %163 = vmatprep.mubr.bf16.mxu0 0
    %164 = vmatmul.mubr.bf16.gmra.mxu0 %v115
    %v165 = vpop.f32.mrf.mxu0
    %v166 = vadd.f32 %v63, %v165
    %v167 = vpop.f32.mrf.mxu0
    %v168 = vpop.f32.mrf.mxu0
    %v169 = vadd.f32 %v68, %v168
    %v170 = vpop.f32.mrf.mxu0
    %171 = vmatprep.mubr.bf16.mxu0 0
    %172 = vmatmul.mubr.bf16.gmra.mxu0 %v118
    %v173 = vpop.f32.mrf.mxu0
    %v174 = vadd.f32 %v73, %v173
    %v175 = vpop.f32.mrf.mxu0
    %v176 = vpop.f32.mrf.mxu0
    %v177 = vadd.f32 %v78, %v176
    %v178 = vpop.f32.mrf.mxu0
    %179 = vmatprep.mubr.bf16.mxu0 0
    %180 = vmatmul.mubr.bf16.gmra.mxu0 %v121
    %v181 = vpop.f32.mrf.mxu0
    %v182 = vadd.f32 %v83, %v181
    %v183 = vpop.f32.mrf.mxu0
    %v184 = vpop.f32.mrf.mxu0
    %v185 = vadd.f32 %v88, %v184
    %v186 = vpop.f32.mrf.mxu0
    %187 = vdwg.mxu0
    %v188 = vmax.f32 %v158, 0.0
    %v189 = vmax.f32 %v161, 0.0
    %v190 = vmax.f32 %v166, 0.0
    %v191 = vmax.f32 %v169, 0.0
    %v192 = vmax.f32 %v174, 0.0
    %v193 = vmax.f32 %v177, 0.0
    %v194 = vmax.f32 %v182, 0.0
    %v195 = vmax.f32 %v185, 0.0
    %v196 = vld [vmem:[%s3] sm:$0xf]
    %v197 = vld [vmem:[%s3 + $0x4] sm:$0xf]
    %v198 = vld [vmem:[%s3 + $0x8] sm:$0xf]
    %v199 = vld [vmem:[%s3 + $0xc] sm:$0xf]
    %v200 = vld [vmem:[%s3 + $0x10] sm:$0xf]
    %v201 = vld [vmem:[%s3 + $0x14] sm:$0xf]
    %v202 = vld [vmem:[%s3 + $0x18] sm:$0xf]
    %v203 = vld [vmem:[%s3 + $0x1c] sm:$0xf]
    %v204 = vpack.c.bf16 %v189, %v188
    %v205 = vpack.c.bf16 %v191, %v190
    %v206 = vpack.c.bf16 %v193, %v192
    %v207 = vpack.c.bf16 %v195, %v194
    %v208 = vld [vmem:[%s4] sm:$0xff]
    %v209 = vld [vmem:[%s4 + $0x8] sm:$0xff]
    %v210 = vld [vmem:[%s4 + $0x10] sm:$0xff]
    %v211 = vld [vmem:[%s4 + $0x18] sm:$0xff]
    %v212 = vld [vmem:[%s4 + $0x20] sm:$0xff]
    %v213 = vld [vmem:[%s4 + $0x28] sm:$0xff]
    %v214 = vld [vmem:[%s4 + $0x30] sm:$0xff]
    %v215 = vld [vmem:[%s4 + $0x38] sm:$0xff]
    %217 = vset.pattern.permute.xlu0 0
    %218 = vperm.xlu0 %217, %v208
    %v219 = vpop.permute.xlu0 %218
    %222 = vset.pattern.permute.xlu0 0
    %223 = vperm.xlu0 %222, %v209
    %v224 = vpop.permute.xlu0 %223
    %227 = vset.pattern.permute.xlu0 0
    %228 = vperm.xlu0 %227, %v210
    %v229 = vpop.permute.xlu0 %228
    %232 = vset.pattern.permute.xlu0 0
    %233 = vperm.xlu0 %232, %v211
    %v234 = vpop.permute.xlu0 %233
    %237 = vset.pattern.permute.xlu0 0
    %238 = vperm.xlu0 %237, %v212
    %v239 = vpop.permute.xlu0 %238
    %242 = vset.pattern.permute.xlu0 0
    %243 = vperm.xlu0 %242, %v213
    %v244 = vpop.permute.xlu0 %243
    %247 = vset.pattern.permute.xlu0 0
    %248 = vperm.xlu0 %247, %v214
    %v249 = vpop.permute.xlu0 %248
    %252 = vset.pattern.permute.xlu0 0
    %253 = vperm.xlu0 %252, %v215
    %v254 = vpop.permute.xlu0 %253
    %v264 = vunpack.c.l.b16 %v196
    %v265 = vunpack.c.l.b16 %v197
    %v266 = vunpack.c.l.b16 %v198
    %v267 = vunpack.c.l.b16 %v199
    %v268 = vunpack.c.l.b16 %v200
    %v269 = vunpack.c.l.b16 %v201
    %v270 = vunpack.c.l.b16 %v202
    %v271 = vunpack.c.l.b16 %v203
    %v272 = vpack.c.b16 %v265, %v264
    %v273 = vpack.c.b16 %v267, %v266
    %v274 = vpack.c.b16 %v269, %v268
    %v275 = vpack.c.b16 %v271, %v270
    %vm276 = vcmask 523264
    %v278 = vsel %vm276, %v272, 0
    %v281 = vsel %vm276, %v273, 0
    %v284 = vsel %vm276, %v274, 0
    %v287 = vsel %vm276, %v275, 0
    %289 = vmatprep.subr.bf16.mxu0 0
    %290 = vmatpush1.bf16.msra.mxu0 0
    %291 = vmatprep.subr.bf16.mxu0 0
    %292 = vmatpush1.bf16.msra.mxu0 0
    %293 = vmatprep.subr.bf16.mxu0 0
    %294 = vmatpush1.bf16.msra.mxu0 0
    %295 = vmatprep.subr.bf16.mxu0 0
    %296 = vmatpush1.bf16.msra.mxu0 0
    %297 = vmatprep.subr.bf16.mxu0 0
    %298 = vmatpush1.bf16.msra.mxu0 %v207
    %299 = vmatprep.subr.bf16.mxu0 0
    %300 = vmatpush1.bf16.msra.mxu0 %v206
    %301 = vmatprep.subr.bf16.mxu0 0
    %302 = vmatpush1.bf16.msra.mxu0 %v205
    %303 = vmatprep.subr.bf16.mxu0 0
    %304 = vmatpush1.bf16.msra.mxu0 %v204
    %305 = vmatprep.subr.bf16.mxu0 0
    %306 = vmatpush2.bf16.msra.mxu0 0
    %307 = vmatprep.subr.bf16.mxu0 0
    %308 = vmatpush2.bf16.msra.mxu0 0
    %309 = vmatprep.subr.bf16.mxu0 0
    %310 = vmatpush2.bf16.msra.mxu0 0
    %311 = vmatprep.subr.bf16.mxu0 0
    %312 = vmatpush2.bf16.msra.mxu0 0
    %313 = vmatprep.subr.bf16.mxu0 0
    %314 = vmatpush2.bf16.msra.mxu0 0
    %315 = vmatprep.subr.bf16.mxu0 0
    %316 = vmatpush2.bf16.msra.mxu0 0
    %317 = vmatprep.subr.bf16.mxu0 0
    %318 = vmatpush2.bf16.msra.mxu0 0
    %319 = vmatprep.subr.bf16.mxu0 0
    %320 = vmatpush2.bf16.msra.mxu0 0
    %321 = vmatprep.mubr.bf16.mxu0 0
    %322 = vmatmul.mubr.bf16.gmra.mxu0 %v278
    %v323 = vpop.f32.mrf.mxu0
    %v324 = vadd.f32 %v219, %v323
    %v325 = vpop.f32.mrf.mxu0
    %v326 = vpop.f32.mrf.mxu0
    %v327 = vadd.f32 %v224, %v326
    %v328 = vpop.f32.mrf.mxu0
    %329 = vmatprep.mubr.bf16.mxu0 0
    %330 = vmatmul.mubr.bf16.gmra.mxu0 %v281
    %v331 = vpop.f32.mrf.mxu0
    %v332 = vadd.f32 %v229, %v331
    %v333 = vpop.f32.mrf.mxu0
    %v334 = vpop.f32.mrf.mxu0
    %v335 = vadd.f32 %v234, %v334
    %v336 = vpop.f32.mrf.mxu0
    %337 = vmatprep.mubr.bf16.mxu0 0
    %338 = vmatmul.mubr.bf16.gmra.mxu0 %v284
    %v339 = vpop.f32.mrf.mxu0
    %v340 = vadd.f32 %v239, %v339
    %v341 = vpop.f32.mrf.mxu0
    %v342 = vpop.f32.mrf.mxu0
    %v343 = vadd.f32 %v244, %v342
    %v344 = vpop.f32.mrf.mxu0
    %345 = vmatprep.mubr.bf16.mxu0 0
    %346 = vmatmul.mubr.bf16.gmra.mxu0 %v287
    %v347 = vpop.f32.mrf.mxu0
    %v348 = vadd.f32 %v249, %v347
    %v349 = vpop.f32.mrf.mxu0
    %v350 = vpop.f32.mrf.mxu0
    %v351 = vadd.f32 %v254, %v350
    %v352 = vpop.f32.mrf.mxu0
    %353 = vdwg.mxu0
    %v354 = vmax.f32 %v324, 0.0
    %v355 = vmax.f32 %v327, 0.0
    %v356 = vmax.f32 %v332, 0.0
    %v357 = vmax.f32 %v335, 0.0
    %v358 = vmax.f32 %v340, 0.0
    %v359 = vmax.f32 %v343, 0.0
    %v360 = vmax.f32 %v348, 0.0
    %v361 = vmax.f32 %v351, 0.0
    %v362 = vld [vmem:[%s5] sm:$0xf]
    %v363 = vpack.c.bf16 %v355, %v354
    %v364 = vpack.c.bf16 %v357, %v356
    %v365 = vpack.c.bf16 %v359, %v358
    %v366 = vpack.c.bf16 %v361, %v360
    %v367 = vld [vmem:[%s6] sm:$0xff]
    %369 = vset.pattern.permute.xlu0 0
    %370 = vperm.xlu0 %369, %v367
    %v371 = vpop.permute.xlu0 %370
    %v374 = vsel %vm276, %v362, 0
    %376 = vmatprep.subr.bf16.mxu0 0
    %377 = vmatpush1.bf16.msra.mxu0 0
    %378 = vmatprep.subr.bf16.mxu0 0
    %379 = vmatpush1.bf16.msra.mxu0 0
    %380 = vmatprep.subr.bf16.mxu0 0
    %381 = vmatpush1.bf16.msra.mxu0 0
    %382 = vmatprep.subr.bf16.mxu0 0
    %383 = vmatpush1.bf16.msra.mxu0 0
    %384 = vmatprep.subr.bf16.mxu0 0
    %385 = vmatpush1.bf16.msra.mxu0 %v366
    %386 = vmatprep.subr.bf16.mxu0 0
    %387 = vmatpush1.bf16.msra.mxu0 %v365
    %388 = vmatprep.subr.bf16.mxu0 0
    %389 = vmatpush1.bf16.msra.mxu0 %v364
    %390 = vmatprep.subr.bf16.mxu0 0
    %391 = vmatpush1.bf16.msra.mxu0 %v363
    %392 = vmatprep.subr.bf16.mxu0 0
    %393 = vmatpush2.bf16.msra.mxu0 0
    %394 = vmatprep.subr.bf16.mxu0 0
    %395 = vmatpush2.bf16.msra.mxu0 0
    %396 = vmatprep.subr.bf16.mxu0 0
    %397 = vmatpush2.bf16.msra.mxu0 0
    %398 = vmatprep.subr.bf16.mxu0 0
    %399 = vmatpush2.bf16.msra.mxu0 0
    %400 = vmatprep.subr.bf16.mxu0 0
    %401 = vmatpush2.bf16.msra.mxu0 0
    %402 = vmatprep.subr.bf16.mxu0 0
    %403 = vmatpush2.bf16.msra.mxu0 0
    %404 = vmatprep.subr.bf16.mxu0 0
    %405 = vmatpush2.bf16.msra.mxu0 0
    %406 = vmatprep.subr.bf16.mxu0 0
    %407 = vmatpush2.bf16.msra.mxu0 0
    %408 = vmatprep.mubr.bf16.mxu0 0
    %409 = vmatmul.mubr.bf16.gmra.mxu0 %v374
    %v410 = vpop.f32.mrf.mxu0
    %v411 = vadd.f32 %v371, %v410
    %v412 = vpop.f32.mrf.mxu0
    %v413 = vpop.f32.mrf.mxu0
    %v414 = vpop.f32.mrf.mxu0
    %415 = vdwg.mxu0
    %vm416 = vcmask 64512
    %v417 = vsel %vm416, %v411, -inf
    %v418 = vrot.slane %v417, 4
    %v419 = vmax.f32 %v417, %v418
    %v420 = vrot.slane %v419, 2
    %v421 = vmax.f32 %v419, %v420
    %v422 = vrot.slane %v421, 1
    %v423 = vmax.f32 %v421, %v422
    %v424 = vsub.f32 %v411, %v423
    %v425 = vmul.f32 %v424, 1.442695
    %v426 = vpow.pop %v425
    %v427 = vsel %vm416, %v426, 0.0
    %v428 = vrot.slane %v427, 4
    %v429 = vadd.f32 %v427, %v428
    %v430 = vrot.slane %v429, 2
    %v431 = vadd.f32 %v429, %v430
    %v432 = vrot.slane %v431, 1
    %v433 = vadd.f32 %v431, %v432
    %v434 = vrcp.pop %v433
    %v435 = vmul.f32 %v426, %v434
    %436 = vst.msk [vmem:[#allocation2] sm:$0xff] %vm416, %v435
    // Predicated region
    $region30: #{tpu_custom_call.1} parent=1 // pred_check
      _
    $region31: #{tpu_custom_call.1} parent=1 // pred_check_branch
      %438 = sbr.rel (0) target = $region33
    $region32: #{tpu_custom_call.1} parent=1 // pred_region
      %s440 = ssub.s32 128, 128
      %441 = vsyncadd [#allocation3], %s440
      %s443 = sshll.u32 [#allocation2], 4
      %s444 = int_to_ptr.vmem [resolvable:$true] %s443
      %446 = dma.vmem_to_hbm [thread:$0]  %s444, 128, %s7, [#allocation3]
    $region33: #{tpu_custom_call.1} parent=1 // pred_fallthru
      _
    // Predicated region
    $region34: #{tpu_custom_call.1} parent=1 // pred_check
      _
    $region35: #{tpu_custom_call.1} parent=1 // pred_check_branch
      %448 = sbr.rel (0) target = $region37
    $region36: #{tpu_custom_call.1} parent=1 // pred_region
      %449 = dma.done [#allocation3], 128
    $region37: #{tpu_custom_call.1} parent=1 // pred_fallthru
      _
    %450 = vsyncpa [#allocation3], 1

</llo_original>
